<compile_context>
chip_gen: v7x
topology: tpu7x:2x2x1
jax: 0.10.0
libtpu: 0.0.40
codegen_flags: <defaults>
</compile_context>

<pallas_src>
import functools

import numpy as np
import jax
import jax.numpy as jnp
from jax.experimental import pallas as pl
from jax.experimental.pallas import tpu as pltpu

LANES = 128          # vreg lane width; 32 packed 4-wide actions per row
ACTION_DIM = 4       # fixed in the reference module
TILE_ROWS = 1024     # row tile for large batches (512 KiB f32 per tile)


def _uniform_action_kernel(seed_ref, o_ref):
    """Fill o_ref (f32 [tile_rows, 128]) with uniform values in [-1, 1).

    Counter-based hash PRNG: each element's global index is mixed with the
    per-call seed ("lowbias32" finalizer). Deterministic, portable (no
    TPU-only stateful PRNG primitives), VPU-only work.
    """
    tile_rows, lanes = o_ref.shape
    r = jax.lax.broadcasted_iota(jnp.int32, (tile_rows, lanes), 0)
    c = jax.lax.broadcasted_iota(jnp.int32, (tile_rows, lanes), 1)
    row0 = pl.program_id(0) * tile_rows
    idx = ((row0 + r) * lanes + c).astype(jnp.uint32)
    seed = seed_ref[0].astype(jnp.uint32)

    # NOTE: seed advances by 1 per call; the multiplicative salt + avalanche
    # mix decorrelates consecutive calls (adequate for a debug policy).
    x = idx * jnp.uint32(0x9E3779B9) + seed * jnp.uint32(0x85EBCA6B)
    x = (x ^ (x >> 16)) * jnp.uint32(0x7FEB352D)
    x = (x ^ (x >> 15)) * jnp.uint32(0x846CA68B)
    x = x ^ (x >> 16)

    # Top 24 random bits -> [0, 2) -> [-1, 1); affine folded into one mul+sub.
    u24 = (x >> 8).astype(jnp.int32).astype(jnp.float32)
    o_ref[...] = u24 * jnp.float32(2.0 ** -23) - jnp.float32(1.0)


@functools.partial(jax.jit, static_argnames=("action_shape",))
def _sample_uniform_action(counter, *, action_shape):
    """One fused dispatch: seed -> pallas PRNG slab -> slice/reshape."""
    n_elems = int(np.prod(action_shape))               # static
    needed_rows = -(-n_elems // LANES)                 # ceil
    rows = max(8, ((needed_rows + 7) // 8) * 8)        # sublane multiple of 8
    if rows > TILE_ROWS:
        rows = ((rows + TILE_ROWS - 1) // TILE_ROWS) * TILE_ROWS
        tile = TILE_ROWS
    else:
        tile = rows
    grid_rows = rows // tile

    seed = jnp.reshape(counter, (1,)).astype(jnp.int32)   # device-resident
    slab = pl.pallas_call(
        _uniform_action_kernel,
        out_shape=jax.ShapeDtypeStruct((rows, LANES), jnp.float32),
        grid=(grid_rows,),
        in_specs=[pl.BlockSpec(memory_space=pltpu.MemorySpace.SMEM)],
        out_specs=pl.BlockSpec((tile, LANES), lambda i: (i, 0)),
        compiler_params=(
            pltpu.CompilerParams(dimension_semantics=("parallel",))
            if grid_rows > 1 else None),
    )(seed)

    action = slab.reshape(-1)[:n_elems].reshape(action_shape)
    return action, counter + 1


@jax.jit
def _select_fixed_action(actions, idx):
    """Cyclic row select on the un-padded (k, 4) table, fully fused.

    Per perf review this is plain-JAX indexing inside the jit (a kernel launch
    plus a full-table DMA would dwarf the 16-byte gather it performs).
    """
    row = jax.lax.dynamic_index_in_dim(actions, idx, axis=0, keepdims=False)
    action = jnp.broadcast_to(row, (1, 1, ACTION_DIM))
    next_idx = (idx + 1) % actions.shape[0]
    return action, next_idx


class DebugPolicyPallas:
    """JAX/Pallas equivalent of the PyTorch `debug_policy` module.

    The "tensordict" is modeled as a plain dict keyed by tuples, matching the
    ('agents', 'observation') / ('agents', 'action') key convention.
    """

    OBS_KEY = ("agents", "observation")
    ACT_KEY = ("agents", "action")

    def __init__(self, actions=None, seed=0):
        # No learnable parameters in the reference module.
        self.actions = None
        self.i = 0                                             # host mirror of the cyclic counter
        self._counter = jnp.asarray(int(seed), dtype=jnp.int32)  # on-device seed/call counter
        if actions is not None:
            acts = jnp.asarray(actions, dtype=jnp.float32)
            assert acts.shape[-1] == ACTION_DIM
            self.actions = acts.reshape(-1, ACTION_DIM)        # (k, 4), no lane padding
            self._idx = jnp.asarray(0, dtype=jnp.int32)        # on-device cyclic index

    def __call__(self, tensordict):
        if self.actions is not None:
            action, self._idx = _select_fixed_action(self.actions, self._idx)
            self.i = (self.i + 1) % int(self.actions.shape[0])
        else:
            obs = tensordict[self.OBS_KEY]
            action_shape = tuple(obs.shape[:-2]) + (1, ACTION_DIM)
            action, self._counter = _sample_uniform_action(
                self._counter, action_shape=action_shape)
        tensordict[self.ACT_KEY] = action
        return tensordict


if __name__ == "__main__":
    key = jax.random.PRNGKey(0)

    # Small observation consistent with the module:
    # obs.shape[:-2] + (1, 4) -> action shape (2, 1, 1, 4)
    obs = jax.random.normal(key, (2, 1, 8, 32), dtype=jnp.float32)

    # --- random-action branch (actions=None) ---
    policy = DebugPolicyPallas(actions=None, seed=0)
    out = policy({("agents", "observation"): obs})
    action = out[("agents", "action")]
    jax.block_until_ready(action)
    assert action.shape == (2, 1, 1, ACTION_DIM), action.shape
    assert action.dtype == jnp.float32
    assert bool(jnp.all(action >= -1.0)) and bool(jnp.all(action < 1.0))

    # Second call advances the on-device counter -> a fresh sample.
    out_b = policy({("agents", "observation"): obs})
    action_b = out_b[("agents", "action")]
    jax.block_until_ready(action_b)
    assert action_b.shape == (2, 1, 1, ACTION_DIM)
    assert bool(jnp.all(action_b >= -1.0)) and bool(jnp.all(action_b < 1.0))
    assert not bool(jnp.all(action_b == action))

    # --- fixed-actions branch (cyclic selection) ---
    fixed_actions = jnp.arange(12, dtype=jnp.float32).reshape(3, ACTION_DIM)
    policy2 = DebugPolicyPallas(actions=fixed_actions)
    a2 = policy2({("agents", "observation"): obs})[("agents", "action")]
    jax.block_until_ready(a2)
    assert a2.shape == (1, 1, ACTION_DIM), a2.shape
    np.testing.assert_allclose(
        np.asarray(a2).reshape(ACTION_DIM),
        np.arange(ACTION_DIM, dtype=np.float32))
    assert policy2.i == 1  # cyclic counter advanced, mirroring self.i in torch

    a3 = policy2({("agents", "observation"): obs})[("agents", "action")]
    jax.block_until_ready(a3)
    np.testing.assert_allclose(
        np.asarray(a3).reshape(ACTION_DIM),
        np.arange(ACTION_DIM, 2 * ACTION_DIM, dtype=np.float32))
    assert policy2.i == 2

    print("KERNEL_OK")
</pallas_src>

<mosaic_0001>
module attributes {stable_mosaic.version = 11 : i64} {
  func.func @_uniform_action_kernel(%arg0: i32, %arg1: memref<1xi32, #tpu.memory_space<smem>>, %arg2: memref<8x128xf32, #tpu.memory_space<vmem>>) attributes {dimension_semantics = [#tpu.dimension_semantics<arbitrary>], iteration_bounds = array<i64: 1>, scalar_prefetch = 0 : i64, scratch_operands = 0 : i64, tpu.core_type = #tpu.core_type<tc>, window_params = [{transform_indices = @transform_0, window_bounds = array<i64: 1>}, {transform_indices = @transform_1, window_bounds = array<i64: 8, 128>}]} {
    %0 = tpu.iota {dimensions = array<i32: 0>} : vector<8x128xi32>
    %1 = tpu.iota {dimensions = array<i32: 1>} : vector<8x128xi32>
    %c8_i32 = arith.constant 8 : i32
    %2 = arith.muli %arg0, %c8_i32 : i32
    %3 = vector.broadcast %2 : i32 to vector<8x128xi32>
    %4 = arith.addi %3, %0 : vector<8x128xi32>
    %c128_i32 = arith.constant 128 : i32
    %5 = vector.broadcast %c128_i32 : i32 to vector<8x128xi32>
    %6 = arith.muli %4, %5 : vector<8x128xi32>
    %7 = arith.addi %6, %1 : vector<8x128xi32>
    %c0 = arith.constant 0 : index
    %8 = memref.load %arg1[%c0] : memref<1xi32, #tpu.memory_space<smem>>
    %c-1640531527_i32 = arith.constant -1640531527 : i32
    %9 = vector.broadcast %c-1640531527_i32 : i32 to vector<8x128xi32>
    %10 = arith.muli %7, %9 : vector<8x128xi32>
    %c-2048144789_i32 = arith.constant -2048144789 : i32
    %11 = arith.muli %8, %c-2048144789_i32 : i32
    %12 = vector.broadcast %11 : i32 to vector<8x128xi32>
    %13 = arith.addi %10, %12 : vector<8x128xi32>
    %c16_i32 = arith.constant 16 : i32
    %14 = vector.broadcast %c16_i32 : i32 to vector<8x128xi32>
    %15 = arith.shrui %13, %14 : vector<8x128xi32>
    %16 = arith.xori %13, %15 : vector<8x128xi32>
    %c2146121005_i32 = arith.constant 2146121005 : i32
    %17 = vector.broadcast %c2146121005_i32 : i32 to vector<8x128xi32>
    %18 = arith.muli %16, %17 : vector<8x128xi32>
    %c15_i32 = arith.constant 15 : i32
    %19 = vector.broadcast %c15_i32 : i32 to vector<8x128xi32>
    %20 = arith.shrui %18, %19 : vector<8x128xi32>
    %21 = arith.xori %18, %20 : vector<8x128xi32>
    %c-2073254261_i32 = arith.constant -2073254261 : i32
    %22 = vector.broadcast %c-2073254261_i32 : i32 to vector<8x128xi32>
    %23 = arith.muli %21, %22 : vector<8x128xi32>
    %c16_i32_0 = arith.constant 16 : i32
    %24 = vector.broadcast %c16_i32_0 : i32 to vector<8x128xi32>
    %25 = arith.shrui %23, %24 : vector<8x128xi32>
    %26 = arith.xori %23, %25 : vector<8x128xi32>
    %c8_i32_1 = arith.constant 8 : i32
    %27 = vector.broadcast %c8_i32_1 : i32 to vector<8x128xi32>
    %28 = arith.shrui %26, %27 : vector<8x128xi32>
    %29 = arith.sitofp %28 : vector<8x128xi32> to vector<8x128xf32>
    %cst = arith.constant 1.1920929E-7 : f32
    %30 = vector.broadcast %cst : f32 to vector<8x128xf32>
    %31 = arith.mulf %29, %30 : vector<8x128xf32>
    %cst_2 = arith.constant 1.000000e+00 : f32
    %32 = vector.broadcast %cst_2 : f32 to vector<8x128xf32>
    %33 = arith.subf %31, %32 : vector<8x128xf32>
    %c0_3 = arith.constant 0 : index
    %c0_4 = arith.constant 0 : index
    %34 = vector.load %arg2[%c0_3, %c0_4] : memref<8x128xf32, #tpu.memory_space<vmem>>, vector<8x128xf32>
    tpu.vector_store %arg2[%c0_3, %c0_4], %33 {strides = array<i32>} : memref<8x128xf32, #tpu.memory_space<vmem>>, vector<8x128xf32>,
    return
  }
  func.func @transform_0(%arg0: i32) -> i32 {
    %c0_i32 = arith.constant 0 : i32
    %c0_i32_0 = arith.constant 0 : i32
    return %c0_i32 : i32
  }
  func.func @transform_1(%arg0: i32) -> (i32, i32) {
    %c0_i32 = arith.constant 0 : i32
    %c0_i32_0 = arith.constant 0 : i32
    return %arg0, %c0_i32 : i32, i32
  }
}

</mosaic_0001>

<llo_original>
// kernel: _sample_uniform_action.1
$region0: #{_sample_uniform_action.1}
  #allocation0 [shape = 'u32[]', space=smem, size = 0x4, offset = 0x4, fixed_abs, tag = 'smem constant byte address 0x4 - core index']
  #allocation1 [shape = 'u32[144,128]{1,0:T(1,128)}', space=vmem, size = 0x12000, scoped, tag = 'internal scratch']
  #allocation2 [shape = 's32[1]{0:T(128)S(6)}', space=smem, size = 0x200, scoped, tag = 'scoped memory for _sample_uniform_action.1']
  %s0 = inlined_call_operand.<no memory space> [shape: s32[1], index: 0, kind: input, shape index: {}]
  %s1 = inlined_call_operand.vmem [shape: f32[8,128], index: 1, kind: output, shape index: {}]
  %s2 = sld [smem:[#allocation0]]
  $region14: #{_sample_uniform_action.1} parent=0
    _
  %s4 = ssub.s32 1, %s2
  %s5 = scalar_select 0, %s4, %s2
  %6 = sst [smem:[#allocation2]] %s0
  // Predicated region
  $region2: #{_sample_uniform_action.1} parent=0 // pred_check
    _
  $region3: #{_sample_uniform_action.1} parent=0 // pred_check_branch
    %8 = sbr.rel (0) target = $region5
  $region4: #{_sample_uniform_action.1} parent=0 // pred_region
    _
  $region5: #{_sample_uniform_action.1} parent=0 // pred_fallthru
    _
  %v9 = vlaneseq
  %v10 = vshrl.u32 %v9, 7
  %v11 = vlaneseq
  %v12 = vand.u32 %v11, 127
  %s13 = smul.u32 0, 8
  %v14 = vstv %s13
  %v15 = vadd.s32 %v14, %v10
  %v16 = vmul.u32 %v15, 128
  %v17 = vadd.s32 %v16, %v12
  %s18 = sld [smem:[#allocation2]]
  %v19 = vmul.u32 %v17, 2654435769
  %s20 = smul.u32 %s18, 2246822507
  %v21 = vstv %s20
  %v22 = vadd.s32 %v19, %v21
  %v23 = vshrl.u32 %v22, 16
  %v24 = vxor.u32 %v22, %v23
  %v25 = vmul.u32 %v24, 2146121005
  %v26 = vshrl.u32 %v25, 15
  %v27 = vxor.u32 %v25, %v26
  %v28 = vmul.u32 %v27, 2221713035
  %v29 = vshrl.u32 %v28, 16
  %v30 = vxor.u32 %v28, %v29
  %v31 = vshrl.u32 %v30, 8
  %v32 = vcvt.s32.f32 %v31
  %v33 = vmul.f32 %v32, 1.1920929e-07
  %v34 = vsub.f32 %v33, 1.0
  %35 = vst [vmem:[%s1] sm:$0xff] %v34
  // Predicated region
  $region6: #{_sample_uniform_action.1} parent=0 // pred_check
    _
  $region7: #{_sample_uniform_action.1} parent=0 // pred_check_branch
    %37 = sbr.rel (0) target = $region9
  $region8: #{_sample_uniform_action.1} parent=0 // pred_region
    _
  $region9: #{_sample_uniform_action.1} parent=0 // pred_fallthru
    _
  // Predicated region
  $region10: #{_sample_uniform_action.1} parent=0 // pred_check
    _
  $region11: #{_sample_uniform_action.1} parent=0 // pred_check_branch
    %39 = sbr.rel (0) target = $region13
  $region12: #{_sample_uniform_action.1} parent=0 // pred_region
    _
  $region13: #{_sample_uniform_action.1} parent=0 // pred_fallthru
    _

</llo_original>
